<compile_context>
chip_gen: v5e
topology: v5e:2x2
jax: 0.10.0
libtpu: 0.0.40
codegen_flags: <defaults>
</compile_context>

<pallas_src>
import functools

import numpy as np
import jax
import jax.numpy as jnp
from jax.experimental import pallas as pl
from jax.experimental.pallas import tpu as pltpu


def _round_up(a, b):
    return (a + b - 1) // b * b


def _encode_strings(strings, max_word_length):
    """Pack strings into int32 chunks exactly like the PyTorch module."""
    arr = np.array(strings, dtype='|S' + str(max_word_length))
    return np.ascontiguousarray(arr).view('int32').reshape(-1, max_word_length // 4)


def _onehot_kernel(x_ref, cond_ref, colid_ref, out_ref, *, W, num_columns):
    # x_ref:     (TN, num_columns * W) int32  -- packed string chunks, natural layout
    # cond_ref:  (W, TC)               int32  -- category chunks for this lane tile
    # colid_ref: (1, TC)               int32  -- column id of each category lane
    # out_ref:   (TN, TC)              out dtype (f32 / bf16) -- one-hot block
    if num_columns > 1:
        col_id = colid_ref[...]                                   # (1, TC), tiny
        col_masks = [col_id == c for c in range(1, num_columns)]  # (1, TC) each

    match = None
    for w in range(W):
        # Lane c must hold x[row, col_of(c), w].  Start from column 0's chunk
        # (folds the old zeros-init) and overlay the other columns with
        # broadcasting selects against the small (1, TC) masks.
        xw = x_ref[:, w:w + 1]                                    # (TN, 1)
        for c in range(1, num_columns):
            xw = jnp.where(col_masks[c - 1],
                           x_ref[:, c * W + w: c * W + w + 1],    # (TN, 1)
                           xw)                                    # -> (TN, TC)
        eq = xw == cond_ref[w:w + 1, :]                           # (TN, TC)
        match = eq if match is None else jnp.logical_and(match, eq)

    # bool -> f32 -> out dtype (no-op second cast for f32; bf16 is exact for 0/1).
    out_ref[...] = match.astype(jnp.float32).astype(out_ref.dtype)


class OneHotEncoderStringPallas:
    """JAX/Pallas port of hummingbird's OneHotEncoderString."""

    # Lane-tile cap for very wide category sets (multiple of 128).
    _LANE_TILE_MAX = 8 * 1024
    # Per single-buffered (x block + out block) VMEM budget.
    _BLOCK_BUDGET = 16 << 20

    def __init__(self, categories, out_dtype=jnp.float32):
        self.num_columns = len(categories)
        self.max_word_length = max(max(len(c) for c in cat) for cat in categories)
        while self.max_word_length % 4 != 0:
            self.max_word_length += 1
        self.W = self.max_word_length // 4
        self.out_dtype = out_dtype

        cond_rows = []
        self.categories_idx = [0]
        for arr in categories:
            enc = _encode_strings(arr, self.max_word_length)        # (n_cat_col, W)
            cond_rows.append(enc)
            self.categories_idx.append(self.categories_idx[-1] + enc.shape[0])
        cond = np.concatenate(cond_rows, axis=0).astype(np.int32)   # (C, W)

        self.condition_tensors = jnp.asarray(cond)                  # (C, W) like torch param
        self.total_categories = int(cond.shape[0])

        # Condition chunks stored as (W, C): word-chunk rows, category lanes.
        self._cond_wc = jnp.asarray(np.ascontiguousarray(cond.T))   # (W, C)

        # Column id of each category lane, (1, C) int32.
        col_id = np.zeros((1, self.total_categories), dtype=np.int32)
        for c in range(self.num_columns):
            col_id[0, self.categories_idx[c]:self.categories_idx[c + 1]] = c
        self._col_id = jnp.asarray(col_id)

    def __call__(self, x):
        # x: (N, num_columns, W) int32 (packed strings, same as the torch module).
        N = int(x.shape[0])
        W = self.W
        C = self.total_categories
        ncw = self.num_columns * W

        # Free reshape -- no HBM gather / transpose of the input.
        x2d = x.reshape(N, ncw).astype(jnp.int32)

        # ---- lane (category) tiling ------------------------------------------------
        if C <= self._LANE_TILE_MAX:
            tc, nlt = C, 1                     # full-width block (legal: == full dim)
        else:
            tc = self._LANE_TILE_MAX           # multiple of 128; ragged last tile OK
            nlt = pl.cdiv(C, tc)

        # ---- batch tiling, VMEM-budgeted for double buffering ----------------------
        out_bytes = jnp.dtype(self.out_dtype).itemsize
        ncw_lanes = _round_up(ncw, 128)        # x block lane padding in VMEM
        tc_lanes = _round_up(tc, 128)          # out/cond block lane padding in VMEM
        row_bytes = 4 * ncw_lanes + out_bytes * tc_lanes
        tn = max(8, min(1024, (self._BLOCK_BUDGET // row_bytes) // 8 * 8))
        # Keep >= ~4 total grid tiles so megacore sharding has work to balance.
        min_batch_tiles = max(1, -(-4 // nlt))
        tn = min(tn, max(8, _round_up(pl.cdiv(N, min_batch_tiles), 8)))
        if tn >= N:
            tn = N                             # single full-dim batch tile
        nbt = pl.cdiv(N, tn)

        tn_pad = _round_up(tn, 8)
        x_block = 4 * tn_pad * ncw_lanes
        out_block = out_bytes * tn_pad * tc_lanes
        cond_block = 4 * _round_up(W, 8) * tc_lanes
        colid_block = 4 * 8 * tc_lanes
        vmem_needed = 2 * (x_block + out_block + cond_block + colid_block) + (2 << 20)
        vmem_limit = int(min(48 << 20, max(8 << 20, vmem_needed)))

        kernel = functools.partial(
            _onehot_kernel, W=W, num_columns=self.num_columns)

        # Grid: (batch tiles, lane tiles); batch outer so x is fetched once per
        # batch tile and the small cond/col_id blocks cycle in the inner axis.
        out = pl.pallas_call(
            kernel,
            out_shape=jax.ShapeDtypeStruct((N, C), self.out_dtype),
            grid=(nbt, nlt),
            in_specs=[
                pl.BlockSpec((tn, ncw), lambda i, j: (i, 0)),
                pl.BlockSpec((W, tc), lambda i, j: (0, j)),
                pl.BlockSpec((1, tc), lambda i, j: (0, j)),
            ],
            out_specs=pl.BlockSpec((tn, tc), lambda i, j: (i, j)),
            compiler_params=pltpu.CompilerParams(
                dimension_semantics=("parallel", "parallel"),
                vmem_limit_bytes=vmem_limit,
            ),
        )(x2d, self._cond_wc, self._col_id)

        return out


def reference_forward(x, enc):
    """Pure-JAX port of the PyTorch forward for verification."""
    outs = []
    for i in range(enc.num_columns):
        cond = enc.condition_tensors[enc.categories_idx[i]:enc.categories_idx[i + 1], :]
        eq = (x[:, i:i + 1, :] == cond[None, :, :]).astype(jnp.int32)
        outs.append(jnp.prod(eq, axis=2))
    return jnp.concatenate(outs, axis=1).astype(jnp.float32)


if __name__ == "__main__":
    categories = [
        ["apple", "banana", "cherry"],
        ["red", "green", "blue", "yellow", "black"],
    ]
    enc = OneHotEncoderStringPallas(categories)

    # Deliberately not a multiple of the batch tile to exercise the ragged tile path.
    N = 37
    key = jax.random.PRNGKey(0)
    keys = jax.random.split(key, enc.num_columns)
    vocab = [cat + ["unk"] for cat in categories]
    x_cols = []
    for col in range(enc.num_columns):
        idx = np.asarray(jax.random.randint(keys[col], (N,), 0, len(vocab[col])))
        words = [vocab[col][j] for j in idx]
        x_cols.append(_encode_strings(words, enc.max_word_length))   # (N, W)
    x = jnp.asarray(np.stack(x_cols, axis=1), dtype=jnp.int32)       # (N, num_cols, W)

    out = jax.block_until_ready(enc(x))
    ref = reference_forward(x, enc)

    assert out.shape == (N, enc.total_categories), out.shape
    assert out.dtype == jnp.float32
    np.testing.assert_array_equal(np.asarray(out), np.asarray(ref))

    # bf16 output path (exact for one-hot values): halves the writeback stream.
    enc_bf16 = OneHotEncoderStringPallas(categories, out_dtype=jnp.bfloat16)
    out_bf16 = jax.block_until_ready(enc_bf16(x))
    np.testing.assert_array_equal(np.asarray(out_bf16).astype(np.float32),
                                  np.asarray(ref))

    print("KERNEL_OK")
</pallas_src>

<mosaic_0001>
module attributes {stable_mosaic.version = 11 : i64} {
  func.func @_onehot_kernel(%arg0: i32, %arg1: i32, %arg2: memref<16x4xi32, #tpu.memory_space<vmem>>, %arg3: memref<2x8xi32, #tpu.memory_space<vmem>>, %arg4: memref<1x8xi32, #tpu.memory_space<vmem>>, %arg5: memref<16x8xf32, #tpu.memory_space<vmem>>) attributes {dimension_semantics = [#tpu.dimension_semantics<parallel>, #tpu.dimension_semantics<parallel>], iteration_bounds = array<i64: 3, 1>, scalar_prefetch = 0 : i64, scratch_operands = 0 : i64, tpu.core_type = #tpu.core_type<tc>, window_params = [{transform_indices = @transform_0, window_bounds = array<i64: 16, 4>}, {transform_indices = @transform_1, window_bounds = array<i64: 2, 8>}, {transform_indices = @transform_2, window_bounds = array<i64: 1, 8>}, {transform_indices = @transform_3, window_bounds = array<i64: 16, 8>}]} {
    %c0 = arith.constant 0 : index
    %c0_0 = arith.constant 0 : index
    %0 = vector.load %arg4[%c0, %c0_0] : memref<1x8xi32, #tpu.memory_space<vmem>>, vector<1x8xi32>
    %c1_i32 = arith.constant 1 : i32
    %1 = vector.broadcast %c1_i32 : i32 to vector<1x8xi32>
    %2 = arith.cmpi eq, %0, %1 : vector<1x8xi32>
    %c0_1 = arith.constant 0 : index
    %c0_2 = arith.constant 0 : index
    %3 = vector.load %arg2[%c0_1, %c0_2] : memref<16x4xi32, #tpu.memory_space<vmem>>, vector<16x1xi32>
    %c0_3 = arith.constant 0 : index
    %c2 = arith.constant 2 : index
    %4 = vector.load %arg2[%c0_3, %c2] : memref<16x4xi32, #tpu.memory_space<vmem>>, vector<16x1xi32>
    %5 = vector.shape_cast %2 : vector<1x8xi1> to vector<1x8xi1>
    %6 = vector.broadcast %5 : vector<1x8xi1> to vector<16x8xi1>
    %7 = vector.shape_cast %4 : vector<16x1xi32> to vector<16x1xi32>
    %8 = vector.broadcast %7 : vector<16x1xi32> to vector<16x8xi32>
    %9 = vector.shape_cast %3 : vector<16x1xi32> to vector<16x1xi32>
    %10 = vector.broadcast %9 : vector<16x1xi32> to vector<16x8xi32>
    %11 = arith.select %6, %8, %10 : vector<16x8xi1>, vector<16x8xi32>
    %c0_4 = arith.constant 0 : index
    %c0_5 = arith.constant 0 : index
    %12 = vector.load %arg3[%c0_4, %c0_5] : memref<2x8xi32, #tpu.memory_space<vmem>>, vector<1x8xi32>
    %13 = vector.broadcast %12 : vector<1x8xi32> to vector<16x8xi32>
    %14 = arith.cmpi eq, %11, %13 : vector<16x8xi32>
    %c0_6 = arith.constant 0 : index
    %c1 = arith.constant 1 : index
    %15 = vector.load %arg2[%c0_6, %c1] : memref<16x4xi32, #tpu.memory_space<vmem>>, vector<16x1xi32>
    %c0_7 = arith.constant 0 : index
    %c3 = arith.constant 3 : index
    %16 = vector.load %arg2[%c0_7, %c3] : memref<16x4xi32, #tpu.memory_space<vmem>>, vector<16x1xi32>
    %17 = vector.shape_cast %2 : vector<1x8xi1> to vector<1x8xi1>
    %18 = vector.broadcast %17 : vector<1x8xi1> to vector<16x8xi1>
    %19 = vector.shape_cast %16 : vector<16x1xi32> to vector<16x1xi32>
    %20 = vector.broadcast %19 : vector<16x1xi32> to vector<16x8xi32>
    %21 = vector.shape_cast %15 : vector<16x1xi32> to vector<16x1xi32>
    %22 = vector.broadcast %21 : vector<16x1xi32> to vector<16x8xi32>
    %23 = arith.select %18, %20, %22 : vector<16x8xi1>, vector<16x8xi32>
    %c1_8 = arith.constant 1 : index
    %c0_9 = arith.constant 0 : index
    %24 = vector.load %arg3[%c1_8, %c0_9] : memref<2x8xi32, #tpu.memory_space<vmem>>, vector<1x8xi32>
    %25 = vector.broadcast %24 : vector<1x8xi32> to vector<16x8xi32>
    %26 = arith.cmpi eq, %23, %25 : vector<16x8xi32>
    %27 = arith.andi %14, %26 : vector<16x8xi1>
    %28 = arith.extui %27 : vector<16x8xi1> to vector<16x8xi32>
    %29 = arith.sitofp %28 : vector<16x8xi32> to vector<16x8xf32>
    %c0_10 = arith.constant 0 : index
    %c0_11 = arith.constant 0 : index
    %30 = vector.load %arg5[%c0_10, %c0_11] : memref<16x8xf32, #tpu.memory_space<vmem>>, vector<16x8xf32>
    tpu.vector_store %arg5[%c0_10, %c0_11], %29 {strides = array<i32>} : memref<16x8xf32, #tpu.memory_space<vmem>>, vector<16x8xf32>,
    return
  }
  func.func @transform_0(%arg0: i32, %arg1: i32) -> (i32, i32) {
    %c0_i32 = arith.constant 0 : i32
    %c0_i32_0 = arith.constant 0 : i32
    return %arg0, %c0_i32 : i32, i32
  }
  func.func @transform_1(%arg0: i32, %arg1: i32) -> (i32, i32) {
    %c0_i32 = arith.constant 0 : i32
    %c0_i32_0 = arith.constant 0 : i32
    return %c0_i32, %arg1 : i32, i32
  }
  func.func @transform_2(%arg0: i32, %arg1: i32) -> (i32, i32) {
    %c0_i32 = arith.constant 0 : i32
    %c0_i32_0 = arith.constant 0 : i32
    return %c0_i32, %arg1 : i32, i32
  }
  func.func @transform_3(%arg0: i32, %arg1: i32) -> (i32, i32) {
    %c0_i32 = arith.constant 0 : i32
    return %arg0, %arg1 : i32, i32
  }
}

</mosaic_0001>

<llo_original>
// kernel: tpu_custom_call.1
$region0: #{tpu_custom_call.1}
  #allocation0 [shape = 'u32[]', space=smem, size = 0x4, offset = 0x4, fixed_abs, tag = 'smem constant byte address 0x4 - core index']
  #allocation1 [shape = 'u32[72,128]{1,0:T(1,128)}', space=vmem, size = 0x9000, scoped, tag = 'internal scratch']
  %s0 = inlined_call_operand.vmem [shape: s32[37,4], index: 0, kind: input, shape index: {}]
  %s1 = inlined_call_operand.vmem [shape: s32[2,8], index: 1, kind: input, shape index: {}]
  %s2 = inlined_call_operand.vmem [shape: s32[1,8], index: 2, kind: input, shape index: {}]
  %s3 = inlined_call_operand.vmem [shape: f32[37,8], index: 3, kind: output, shape index: {}]
  %s4 = sld [smem:[#allocation0]]
  $region93: #{tpu_custom_call.1} parent=0
    _
  %s6 = ssub.s32 1, %s4
  %s7 = scalar_select 0, %s6, %s4
  $region1: #{tpu_custom_call.1} parent=0
    #allocation2 [shape = 'u8[16384]{0}', space=vmem, size = 0x4000, scoped, tag = 'output window, operand 0']
    loop: start=0, step=1, limit=5
    $region2: #{tpu_custom_call.1} parent=1 // loop_pre_header
      _
    $region3: #{tpu_custom_call.1} parent=1 // loop_header
      %s9 = sphi 0, %s13
      %p10 = scmp.ge.s32.totalorder %s9, 5
      %s16 = sphi 0, %s28
      %s17 = sphi 0, %s24
      %s18 = sphi 0, %s16
      %s19 = sphi 0, %s17
      %s20 = sphi 0, %s18
      %s21 = sphi 0, %s19
      %s31 = sphi 0, %s33
      %s34 = sphi 0, %s31
      %s35 = sphi 0, %s34
      %s51 = sphi 0, %s35
      %s57 = sphi 0, %s59
      %s60 = sphi 0, %s57
      %s61 = sphi 0, %s60
      %s77 = sphi 0, %s61
      %s83 = sphi 0, %s85
      %s86 = sphi 0, %s83
      %s87 = sphi 0, %s86
      %s103 = sphi 0, %s87
      %s111 = sphi 0, %s113
      %s114 = sphi 0, %s111
      %s115 = sphi 0, %s114
      %s131 = sphi 0, %s115
    $region4: #{tpu_custom_call.1} parent=1 // loop_header_branch
      %12 = sbr.rel (%p10) target = $region8
    $region5: #{tpu_custom_call.1} parent=1 // loop_body
      %s14 = ssub.s32 %s9, 1
      %s15 = ssub.s32 %s9, 2
      %s22 = sadd.s32 1, %s17
      %p23 = scmp.ge.s32.totalorder %s22, 1
      %s24 = scalar_select %p23, 0, %s22
      %s25 = sadd.s32 1, %s16
      %s26 = scalar_select %p23, %s25, %s16
      %p27 = scmp.ge.s32.totalorder %s26, 3
      %s28 = scalar_select %p27, 0, %s26
      %s29 = ssub.s32 %s16, %s28
      %p30 = scmp.eq.s32.totalorder %s29, 0
      %s32 = sadd.s32 %s31, 1
      %s33 = scalar_select %p30, %s31, %s32
      %p36 = pneg %p30
      %p37 = scmp.eq.s32.totalorder %s9, 2
      %p38 = por %p36, %p37
      %p39 = scmp.ne.s32.totalorder %s31, %s34
      %p40 = scmp.eq.s32.totalorder %s9, 0
      %p41 = por %p39, %p40
      %p42 = scmp.ne.s32.totalorder %s31, %s34
      %p43 = scmp.eq.s32.totalorder %s14, 2
      %p44 = por %p42, %p43
      %p45 = scmp.ne.s32.totalorder %s34, %s35
      %p46 = scmp.eq.s32.totalorder %s14, 0
      %p47 = por %p45, %p46
      %p48 = scmp.ne.s32.totalorder %s34, %s35
      %p49 = scmp.eq.s32.totalorder %s15, 2
      %p50 = por %p48, %p49
      %p52 = scmp.ne.s32.totalorder %s35, %s51
      %p53 = scmp.eq.s32.totalorder %s15, 0
      %p54 = por %p52, %p53
      %s55 = ssub.s32 %s17, %s24
      %p56 = scmp.eq.s32.totalorder %s55, 0
      %s58 = sadd.s32 %s57, 1
      %s59 = scalar_select %p56, %s57, %s58
      %p62 = pneg %p56
      %p63 = scmp.eq.s32.totalorder %s9, 2
      %p64 = por %p62, %p63
      %p65 = scmp.ne.s32.totalorder %s57, %s60
      %p66 = scmp.eq.s32.totalorder %s9, 0
      %p67 = por %p65, %p66
      %p68 = scmp.ne.s32.totalorder %s57, %s60
      %p69 = scmp.eq.s32.totalorder %s14, 2
      %p70 = por %p68, %p69
      %p71 = scmp.ne.s32.totalorder %s60, %s61
      %p72 = scmp.eq.s32.totalorder %s14, 0
      %p73 = por %p71, %p72
      %p74 = scmp.ne.s32.totalorder %s60, %s61
      %p75 = scmp.eq.s32.totalorder %s15, 2
      %p76 = por %p74, %p75
      %p78 = scmp.ne.s32.totalorder %s61, %s77
      %p79 = scmp.eq.s32.totalorder %s15, 0
      %p80 = por %p78, %p79
      %s81 = ssub.s32 %s17, %s24
      %p82 = scmp.eq.s32.totalorder %s81, 0
      %s84 = sadd.s32 %s83, 1
      %s85 = scalar_select %p82, %s83, %s84
      %p88 = pneg %p82
      %p89 = scmp.eq.s32.totalorder %s9, 2
      %p90 = por %p88, %p89
      %p91 = scmp.ne.s32.totalorder %s83, %s86
      %p92 = scmp.eq.s32.totalorder %s9, 0
      %p93 = por %p91, %p92
      %p94 = scmp.ne.s32.totalorder %s83, %s86
      %p95 = scmp.eq.s32.totalorder %s14, 2
      %p96 = por %p94, %p95
      %p97 = scmp.ne.s32.totalorder %s86, %s87
      %p98 = scmp.eq.s32.totalorder %s14, 0
      %p99 = por %p97, %p98
      %p100 = scmp.ne.s32.totalorder %s86, %s87
      %p101 = scmp.eq.s32.totalorder %s15, 2
      %p102 = por %p100, %p101
      %p104 = scmp.ne.s32.totalorder %s87, %s103
      %p105 = scmp.eq.s32.totalorder %s15, 0
      %p106 = por %p104, %p105
      %s107 = ssub.s32 %s16, %s28
      %s108 = ssub.s32 %s17, %s24
      %s109 = sor.u32 %s107, %s108
      %p110 = scmp.eq.s32.totalorder %s109, 0
      %s112 = sadd.s32 %s111, 1
      %s113 = scalar_select %p110, %s111, %s112
      %p116 = pneg %p110
      %p117 = scmp.eq.s32.totalorder %s9, 2
      %p118 = por %p116, %p117
      %p119 = scmp.ne.s32.totalorder %s111, %s114
      %p120 = scmp.eq.s32.totalorder %s9, 0
      %p121 = por %p119, %p120
      %p122 = scmp.ne.s32.totalorder %s111, %s114
      %p123 = scmp.eq.s32.totalorder %s14, 2
      %p124 = por %p122, %p123
      %p125 = scmp.ne.s32.totalorder %s114, %s115
      %p126 = scmp.eq.s32.totalorder %s14, 0
      %p127 = por %p125, %p126
      %p128 = scmp.ne.s32.totalorder %s114, %s115
      %p129 = scmp.eq.s32.totalorder %s15, 2
      %p130 = por %p128, %p129
      %p132 = scmp.ne.s32.totalorder %s115, %s131
      %p133 = scmp.eq.s32.totalorder %s15, 0
      %p134 = por %p132, %p133
      %p135 = scmp.le.s32.totalorder 1, %s9
      %p136 = scmp.lt.s32.totalorder %s9, 4
      %p137 = pnand %p135, %p136
      %p138 = pneg %p137
      // Predicated region
      $region9: #{tpu_custom_call.1} parent=5 // pred_check
        _
      $region10: #{tpu_custom_call.1} parent=5 // pred_check_branch
        %140 = sbr.rel (%p137) target = $region12
      $region11: #{tpu_custom_call.1} parent=5 // pred_region
        %s141 = ssub.s32 %s9, 1
        // Predicated region
        $region13: #{tpu_custom_call.1} parent=11 // pred_check
          %p142 = pneg %p73
        $region14: #{tpu_custom_call.1} parent=11 // pred_check_branch
          %144 = sbr.rel (%p142) target = $region16
        $region15: #{tpu_custom_call.1} parent=11 // pred_region
          %p145 = scmp.lt.s32.totalorder %s19, 0
          %s146 = scalar_select %p145, %s19, 0
          %s147 = smul.addr %s146, 2
          %s148 = scalar_lea.vmem %s1, %s147
        $region16: #{tpu_custom_call.1} parent=11 // pred_fallthru
          _
        // Predicated region
        $region17: #{tpu_custom_call.1} parent=11 // pred_check
          %p149 = pneg %p99
        $region18: #{tpu_custom_call.1} parent=11 // pred_check_branch
          %151 = sbr.rel (%p149) target = $region20
        $region19: #{tpu_custom_call.1} parent=11 // pred_region
          %p152 = scmp.lt.s32.totalorder %s19, 0
          %s153 = scalar_select %p152, %s19, 0
          %s154 = scalar_lea.vmem %s2, %s153
        $region20: #{tpu_custom_call.1} parent=11 // pred_fallthru
          _
      $region12: #{tpu_custom_call.1} parent=5 // pred_fallthru
        _
      %p155 = scmp.lt.s32.totalorder %s9, 3
      // Predicated region
      $region21: #{tpu_custom_call.1} parent=5 // pred_check
        %p156 = pneg %p155
      $region22: #{tpu_custom_call.1} parent=5 // pred_check_branch
        %158 = sbr.rel (%p156) target = $region24
      $region23: #{tpu_custom_call.1} parent=5 // pred_region
        // Predicated region
        $region25: #{tpu_custom_call.1} parent=23 // pred_check
          %p159 = pneg %p41
        $region26: #{tpu_custom_call.1} parent=23 // pred_check_branch
          %161 = sbr.rel (%p159) target = $region28
        $region27: #{tpu_custom_call.1} parent=23 // pred_region
          %s162 = smul.u32 2, %s16
          %s163 = ssub.s32 5, %s162
          %p164 = scmp.lt.s32.totalorder %s163, 2
          %s165 = scalar_select %p164, %s163, 2
          %s166 = smul.u32 8, %s165
          %p167 = scmp.lt.s32.totalorder %s162, 4
          %s168 = scalar_select %p167, %s162, 4
          %s169 = smul.addr %s168, 8
          %s170 = scalar_lea.vmem %s0, %s169
          %s171 = smul.u32 2, %s16
          %s172 = ssub.s32 5, %s171
          %p173 = scmp.lt.s32.totalorder %s172, 2
          %s174 = scalar_select %p173, %s172, 2
          %s175 = smul.u32 8, %s174
        $region28: #{tpu_custom_call.1} parent=23 // pred_fallthru
          _
      $region24: #{tpu_custom_call.1} parent=5 // pred_fallthru
        _
      %p176 = scmp.le.s32.totalorder 1, %s9
      %p177 = scmp.lt.s32.totalorder %s9, 4
      %p178 = pnand %p176, %p177
      %p179 = pneg %p178
      // Predicated region
      $region29: #{tpu_custom_call.1} parent=5 // pred_check
        _
      $region30: #{tpu_custom_call.1} parent=5 // pred_check_branch
        %181 = sbr.rel (%p178) target = $region32
      $region31: #{tpu_custom_call.1} parent=5 // pred_region
        %s182 = ssub.s32 %s9, 1
        %s183 = smul.u32 2, %s18
        %s184 = ssub.s32 5, %s183
        %p185 = scmp.lt.s32.totalorder %s184, 2
        %s186 = scalar_select %p185, %s184, 2
        %s187 = smul.u32 8, %s186
        %p188 = scmp.lt.s32.totalorder %s183, 4
        %s189 = scalar_select %p188, %s183, 4
        %s190 = smul.addr %s189, 8
        %s191 = scalar_lea.vmem %s0, %s190
        %p192 = pneg %p47
        %p193 = pneg %p44
        %p194 = scmp.lt.s32.totalorder %s19, 0
        %s195 = scalar_select %p194, %s19, 0
        %s196 = smul.addr %s195, 2
        %s197 = scalar_lea.vmem %s1, %s196
        %p198 = pneg %p73
        %p199 = pneg %p70
        %p200 = scmp.lt.s32.totalorder %s19, 0
        %s201 = scalar_select %p200, %s19, 0
        %s202 = scalar_lea.vmem %s2, %s201
        %p203 = pneg %p99
        %p204 = pneg %p96
        %p205 = pneg %p127
        %p206 = pneg %p124
        %s207 = sand.u32 %s114, 1
        %s208 = sand.u32 %s114, 1
        %s209 = smul.addr %s208, 16
        %s210 = scalar_lea.vmem [#allocation2], %s209
        %s211 = smul.u32 2, %s18
        %s212 = ssub.s32 5, %s211
        %p213 = scmp.lt.s32.totalorder %s212, 2
        %s214 = scalar_select %p213, %s212, 2
        %s215 = smul.u32 8, %s214
        %p216 = scmp.lt.s32.totalorder %s211, 4
        %s217 = scalar_select %p216, %s211, 4
        %s218 = smul.addr %s217, 8
        %s219 = scalar_lea.vmem %s0, %s218
        %s220 = smul.u32 2, %s18
        %s221 = ssub.s32 5, %s220
        %p222 = scmp.lt.s32.totalorder %s221, 2
        %s223 = scalar_select %p222, %s221, 2
        %s224 = smul.u32 8, %s223
        %p225 = scmp.lt.s32.totalorder %s19, 0
        %s226 = scalar_select %p225, %s19, 0
        %s227 = smul.addr %s226, 2
        %s228 = scalar_lea.vmem %s1, %s227
        %p229 = scmp.lt.s32.totalorder %s19, 0
        %s230 = scalar_select %p229, %s19, 0
        %s231 = scalar_lea.vmem %s2, %s230
        %s232 = smul.u32 2, %s18
        %s233 = ssub.s32 5, %s232
        %p234 = scmp.lt.s32.totalorder %s233, 2
        %s235 = scalar_select %p234, %s233, 2
        %s236 = smul.u32 8, %s235
        %v237 = vld [vmem:[%s231] sm:$0x1]
        %vm238 = vcmp.eq.s32.totalorder %v237, 1
        %v239 = vld [vmem:[%s219] sm:$0xff]
        %v240 = vld [vmem:[%s219 + $0x8] sm:$0xff]
        %v241 = vsel %vm238, 1, 0
        %v242 = vperm.slane %v241, 0
        %vm243 = vcmp.eq.s32.totalorder %v242, 1
        %244 = vset.pattern.permute.xlu0 2
        %245 = vperm.xlu0 %244, %v239
        %v246 = vpop.permute.xlu0 %245
        %247 = vset.pattern.permute.xlu0 2
        %248 = vperm.xlu0 %247, %v240
        %v249 = vpop.permute.xlu0 %248
        %250 = vset.pattern.permute.xlu0 0
        %251 = vperm.xlu0 %250, %v239
        %v252 = vpop.permute.xlu0 %251
        %253 = vset.pattern.permute.xlu0 0
        %254 = vperm.xlu0 %253, %v240
        %v255 = vpop.permute.xlu0 %254
        %v256 = vsel %vm243, %v246, %v252
        %v257 = vsel %vm243, %v249, %v255
        %v258 = vld [vmem:[%s228] sm:$0x1]
        %v259 = vperm.slane %v258, 0
        %vm260 = vcmp.eq.s32.totalorder %v256, %v259
        %vm261 = vcmp.eq.s32.totalorder %v257, %v259
        %262 = vset.pattern.permute.xlu0 3
        %263 = vperm.xlu0 %262, %v239
        %v264 = vpop.permute.xlu0 %263
        %265 = vset.pattern.permute.xlu0 3
        %266 = vperm.xlu0 %265, %v240
        %v267 = vpop.permute.xlu0 %266
        %268 = vset.pattern.permute.xlu0 1
        %269 = vperm.xlu0 %268, %v239
        %v270 = vpop.permute.xlu0 %269
        %271 = vset.pattern.permute.xlu0 1
        %272 = vperm.xlu0 %271, %v240
        %v273 = vpop.permute.xlu0 %272
        %v274 = vsel %vm243, %v264, %v270
        %v275 = vsel %vm243, %v267, %v273
        %v276 = vld [vmem:[%s228 + $0x1] sm:$0x1]
        %v277 = vperm.slane %v276, 0
        %vm278 = vcmp.eq.s32.totalorder %v274, %v277
        %vm279 = vcmp.eq.s32.totalorder %v275, %v277
        %vm280 = vmand %vm260, %vm278
        %vm281 = vmand %vm261, %vm279
        %v282 = vsel %vm280, 1, 0
        %v283 = vsel %vm281, 1, 0
        %v284 = vcvt.s32.f32 %v282
        %v285 = vcvt.s32.f32 %v283
        %vm286 = vcmask 64512
        %287 = vst.msk [vmem:[%s210] sm:$0xff] %vm286, %v284
        %288 = vst.msk [vmem:[%s210 + $0x8] sm:$0xff] %vm286, %v285
        %s289 = sand.u32 %s114, 1
        %s290 = sand.u32 %s114, 1
        %s291 = smul.addr %s290, 16
        %s292 = scalar_lea.vmem [#allocation2], %s291
        // Predicated region
        $region33: #{tpu_custom_call.1} parent=31 // pred_check
          %p293 = pneg %p124
        $region34: #{tpu_custom_call.1} parent=31 // pred_check_branch
          %295 = sbr.rel (%p293) target = $region36
        $region35: #{tpu_custom_call.1} parent=31 // pred_region
          %s296 = smul.u32 2, %s18
          %s297 = ssub.s32 5, %s296
          %p298 = scmp.lt.s32.totalorder %s297, 2
          %s299 = scalar_select %p298, %s297, 2
          %s300 = smul.u32 8, %s299
          %p301 = scmp.ne.s32.totalorder 0, %s300
          %s302 = sadd.s32 %s19, %s296
          %s303 = smul.addr %s302, 8
          %s304 = scalar_lea.vmem %s3, %s303
          // Predicated region
          $region37: #{tpu_custom_call.1} parent=35 // pred_check
            %p305 = pneg %p301
          $region38: #{tpu_custom_call.1} parent=35 // pred_check_branch
            %307 = sbr.rel (%p305) target = $region40
          $region39: #{tpu_custom_call.1} parent=35 // pred_region
            // Predicated region
            $region41: #{tpu_custom_call.1} parent=39 // pred_check
              _
            $region42: #{tpu_custom_call.1} parent=39 // pred_check_branch
              %309 = sbr.rel (0) target = $region44
            $region43: #{tpu_custom_call.1} parent=39 // pred_region
              // Predicated region
              $region63: #{tpu_custom_call.1} parent=43 // pred_check
                _
              $region64: #{tpu_custom_call.1} parent=43 // pred_check_branch
                %361 = sbr.rel (0) target = $region66
              $region65: #{tpu_custom_call.1} parent=43 // pred_region
                %s362 = sshrl.u32 %s299, 1
                // While loop
                $region67: #{tpu_custom_call.1} parent=65 // loop_pre_header
                  _
                $region68: #{tpu_custom_call.1} parent=65 // loop_header
                  %s364 = sphi 0, %s366
                  %p365 = scmp.ge.s32.totalorder %s364, %s362
                  %s369 = sphi 0, %s378
                  %s370 = sphi %s292, %s381
                  %s371 = sphi %s304, %s382
                $region69: #{tpu_custom_call.1} parent=65 // loop_header_branch
                  %368 = sbr.rel (%p365) target = $region73
                $region70: #{tpu_custom_call.1} parent=65 // loop_body
                  %v372 = vld [vmem:[%s370] sm:$0xff]
                  %373 = vst [vmem:[%s371] sm:$0xff] %v372
                  %v374 = vld [vmem:[%s370 + $0x8] sm:$0xff]
                  %375 = vst [vmem:[%s371 + $0x8] sm:$0xff] %v374
                  %s376 = sadd.s32 1, %s369
                  %p377 = scmp.ge.s32.totalorder %s376, %s362
                  %s378 = scalar_select %p377, 0, %s376
                  %s379 = smul.u32 %s378, 16
                  %s380 = smul.u32 %s378, 16
                  %s381 = scalar_lea.vmem %s292, %s379 [#allocation2]
                  %s382 = scalar_lea.vmem %s304, %s380
                $region71: #{tpu_custom_call.1} parent=65 // loop_footer
                  %s366 = sadd.s32 %s364, 1
                $region72: #{tpu_custom_call.1} parent=65 // loop_footer_branch
                  %363 = sbr.rel target = $region68
                $region73: #{tpu_custom_call.1} parent=65 // loop_exit
                  _
                %s383 = sshrl.u32 %s299, 1
                %s384 = sand.u32 %s299, 1
                %s385 = smul.u32 %s383, 2
                %s386 = smul.u32 8, %s385
                %s387 = scalar_lea.vmem %s292, %s386 [#allocation2]
                %s388 = smul.u32 8, %s385
                %s389 = scalar_lea.vmem %s304, %s388
                // While loop
                $region74: #{tpu_custom_call.1} parent=65 // loop_pre_header
                  _
                $region75: #{tpu_custom_call.1} parent=65 // loop_header
                  %s391 = sphi 0, %s393
                  %p392 = scmp.ge.s32.totalorder %s391, %s384
                  %s396 = sphi 0, %s403
                  %s397 = sphi %s387, %s406
                  %s398 = sphi %s389, %s407
                $region76: #{tpu_custom_call.1} parent=65 // loop_header_branch
                  %395 = sbr.rel (%p392) target = $region80
                $region77: #{tpu_custom_call.1} parent=65 // loop_body
                  %v399 = vld [vmem:[%s397] sm:$0xff]
                  %400 = vst [vmem:[%s398] sm:$0xff] %v399
                  %s401 = sadd.s32 1, %s396
                  %p402 = scmp.ge.s32.totalorder %s401, %s384
                  %s403 = scalar_select %p402, 0, %s401
                  %s404 = smul.u32 %s403, 8
                  %s405 = smul.u32 %s403, 8
                  %s406 = scalar_lea.vmem %s387, %s404 [#allocation2]
                  %s407 = scalar_lea.vmem %s389, %s405
                $region78: #{tpu_custom_call.1} parent=65 // loop_footer
                  %s393 = sadd.s32 %s391, 1
                $region79: #{tpu_custom_call.1} parent=65 // loop_footer_branch
                  %390 = sbr.rel target = $region75
                $region80: #{tpu_custom_call.1} parent=65 // loop_exit
                  _
              $region66: #{tpu_custom_call.1} parent=43 // pred_fallthru
                _
              // Predicated region
              $region81: #{tpu_custom_call.1} parent=43 // pred_check
                _
              $region82: #{tpu_custom_call.1} parent=43 // pred_check_branch
                %409 = sbr.rel target = $region84
              $region83: #{tpu_custom_call.1} parent=43 // pred_region
                _
              $region84: #{tpu_custom_call.1} parent=43 // pred_fallthru
                _
            $region44: #{tpu_custom_call.1} parent=39 // pred_fallthru
              _
            // Predicated region
            $region45: #{tpu_custom_call.1} parent=39 // pred_check
              _
            $region46: #{tpu_custom_call.1} parent=39 // pred_check_branch
              %311 = sbr.rel target = $region48
            $region47: #{tpu_custom_call.1} parent=39 // pred_region
              %s313 = ssub.s32 256, 1
              %s314 = sshrl.u32 %s299, 1
              // While loop
              $region49: #{tpu_custom_call.1} parent=47 // loop_pre_header
                _
              $region50: #{tpu_custom_call.1} parent=47 // loop_header
                %s316 = sphi 0, %s318
                %p317 = scmp.ge.s32.totalorder %s316, %s314
                %s321 = sphi 0, %s330
                %s322 = sphi %s292, %s333
                %s323 = sphi %s304, %s334
              $region51: #{tpu_custom_call.1} parent=47 // loop_header_branch
                %320 = sbr.rel (%p317) target = $region55
              $region52: #{tpu_custom_call.1} parent=47 // loop_body
                %v324 = vld [vmem:[%s322] sm:%s313]
                %325 = vst [vmem:[%s323] sm:%s313] %v324
                %v326 = vld [vmem:[%s322 + $0x8] sm:%s313]
                %327 = vst [vmem:[%s323 + $0x8] sm:%s313] %v326
                %s328 = sadd.s32 1, %s321
                %p329 = scmp.ge.s32.totalorder %s328, %s314
                %s330 = scalar_select %p329, 0, %s328
                %s331 = smul.u32 %s330, 16
                %s332 = smul.u32 %s330, 16
                %s333 = scalar_lea.vmem %s292, %s331 [#allocation2]
                %s334 = scalar_lea.vmem %s304, %s332
              $region53: #{tpu_custom_call.1} parent=47 // loop_footer
                %s318 = sadd.s32 %s316, 1
              $region54: #{tpu_custom_call.1} parent=47 // loop_footer_branch
                %315 = sbr.rel target = $region50
              $region55: #{tpu_custom_call.1} parent=47 // loop_exit
                _
              %s335 = sshrl.u32 %s299, 1
              %s336 = sand.u32 %s299, 1
              %s337 = smul.u32 %s335, 2
              %s338 = smul.u32 8, %s337
              %s339 = scalar_lea.vmem %s292, %s338 [#allocation2]
              %s340 = smul.u32 8, %s337
              %s341 = scalar_lea.vmem %s304, %s340
              // While loop
              $region56: #{tpu_custom_call.1} parent=47 // loop_pre_header
                _
              $region57: #{tpu_custom_call.1} parent=47 // loop_header
                %s343 = sphi 0, %s345
                %p344 = scmp.ge.s32.totalorder %s343, %s336
                %s348 = sphi 0, %s355
                %s349 = sphi %s339, %s358
                %s350 = sphi %s341, %s359
              $region58: #{tpu_custom_call.1} parent=47 // loop_header_branch
                %347 = sbr.rel (%p344) target = $region62
              $region59: #{tpu_custom_call.1} parent=47 // loop_body
                %v351 = vld [vmem:[%s349] sm:%s313]
                %352 = vst [vmem:[%s350] sm:%s313] %v351
                %s353 = sadd.s32 1, %s348
                %p354 = scmp.ge.s32.totalorder %s353, %s336
                %s355 = scalar_select %p354, 0, %s353
                %s356 = smul.u32 %s355, 8
                %s357 = smul.u32 %s355, 8
                %s358 = scalar_lea.vmem %s339, %s356 [#allocation2]
                %s359 = scalar_lea.vmem %s341, %s357
              $region60: #{tpu_custom_call.1} parent=47 // loop_footer
                %s345 = sadd.s32 %s343, 1
              $region61: #{tpu_custom_call.1} parent=47 // loop_footer_branch
                %342 = sbr.rel target = $region57
              $region62: #{tpu_custom_call.1} parent=47 // loop_exit
                _
            $region48: #{tpu_custom_call.1} parent=39 // pred_fallthru
              _
          $region40: #{tpu_custom_call.1} parent=35 // pred_fallthru
            _
          %410 = vnop
        $region36: #{tpu_custom_call.1} parent=31 // pred_fallthru
          _
      $region32: #{tpu_custom_call.1} parent=5 // pred_fallthru
        _
      %p411 = scmp.le.s32.totalorder 2, %s9
      // Predicated region
      $region85: #{tpu_custom_call.1} parent=5 // pred_check
        %p412 = pneg %p411
      $region86: #{tpu_custom_call.1} parent=5 // pred_check_branch
        %414 = sbr.rel (%p412) target = $region88
      $region87: #{tpu_custom_call.1} parent=5 // pred_region
        %s415 = ssub.s32 %s9, 2
        // Predicated region
        $region89: #{tpu_custom_call.1} parent=87 // pred_check
          %p416 = pneg %p130
        $region90: #{tpu_custom_call.1} parent=87 // pred_check_branch
          %418 = sbr.rel (%p416) target = $region92
        $region91: #{tpu_custom_call.1} parent=87 // pred_region
          %s419 = sand.u32 %s115, 1
          %s420 = sand.u32 %s115, 1
          %s421 = smul.addr %s420, 16
          %s422 = scalar_lea.vmem [#allocation2], %s421
        $region92: #{tpu_custom_call.1} parent=87 // pred_fallthru
          _
      $region88: #{tpu_custom_call.1} parent=5 // pred_fallthru
        _
    $region6: #{tpu_custom_call.1} parent=1 // loop_footer
      %s13 = sadd.s32 1, %s9
    $region7: #{tpu_custom_call.1} parent=1 // loop_footer_branch
      %8 = sbr.rel target = $region3
    $region8: #{tpu_custom_call.1} parent=1 // loop_exit
      _

</llo_original>
